<compile_context>
chip_gen: v5e
topology: v5e:2x2
jax: 0.10.0
libtpu: 0.0.40
codegen_flags: <defaults>
</compile_context>

<pallas_src>
import jax
import jax.numpy as jnp
from jax.experimental import pallas as pl
from jax.experimental.pallas import tpu as pltpu


def _num_embed_kernel(x_ref, wbd_ref, b_ref, o_ref):
    # x_ref:   (tb, F)      batch tile of raw numerical features
    # wbd_ref: (F, F*D)     block-diagonal weights (VMEM-resident)
    # b_ref:   (1, F*D)     row-major flattened biases (VMEM-resident)
    # o_ref:   (tb, F*D)    lane-dense output slab
    acc = jnp.dot(x_ref[...], wbd_ref[...], preferred_element_type=jnp.float32)
    o_ref[...] = (acc + b_ref[...]).astype(o_ref.dtype)
    # TODO(synk): dropout omitted (nn.Dropout is identity in eval mode).


def _round_up(n, m):
    return ((n + m - 1) // m) * m


def numerical_embedding(x, weights, biases, *, block_b=None):
    """x: (B, F); weights/biases: (F, D)  ->  (B, F, D). Eval-mode forward."""
    B, F = x.shape
    F2, D = weights.shape
    assert F == F2 and biases.shape == (F, D)
    FD = F * D

    # Block-diagonal weights: W_bd[f, g*D + d] = weights[g, d] if f == g else 0,
    # so (x @ W_bd)[b, f*D + d] = x[b, f] * weights[f, d].  8 KiB in fp32.
    eye = jnp.eye(F, dtype=jnp.float32)
    w_bd = (eye[:, :, None] * weights.astype(jnp.float32)[None, :, :]).reshape(F, FD)
    b_flat = biases.astype(jnp.float32).reshape(1, FD)

    # Output tile: 512 rows x FD=256 fp32 = 0.5 MiB already sits near the HBM
    # write roofline; cap further so the grid keeps ~8 steps when B is big
    # enough (software pipelining + v7x megacore split), but never below 128
    # rows (writeback-DMA efficiency).
    if block_b is None:
        block_b = 512
        block_b = min(block_b, max(128, _round_up(pl.cdiv(B, 8), 8)))
    block_b = max(8, (block_b // 8) * 8)          # sublane-aligned tile
    if B <= block_b:
        block_b = B                               # single block == full array dim (legal)
    grid_b = pl.cdiv(B, block_b)                  # partial last block is masked by Pallas

    out_flat = pl.pallas_call(
        _num_embed_kernel,
        out_shape=jax.ShapeDtypeStruct((B, FD), x.dtype),
        grid_spec=pltpu.PrefetchScalarGridSpec(
            num_scalar_prefetch=0,
            grid=(grid_b,),
            in_specs=[
                pl.BlockSpec((block_b, F), lambda i: (i, 0)),
                pl.BlockSpec((F, FD), lambda i: (0, 0)),   # VMEM-resident across grid
                pl.BlockSpec((1, FD), lambda i: (0, 0)),   # VMEM-resident across grid
            ],
            out_specs=pl.BlockSpec((block_b, FD), lambda i: (i, 0)),
        ),
        compiler_params=pltpu.CompilerParams(
            dimension_semantics=("parallel",),             # megacore split on v7x
        ),
    )(x, w_bd, b_flat)

    # Row-major (B, F*D) -> (B, F, D) is a free reshape.
    return out_flat.reshape(B, F, D)


if __name__ == "__main__":
    # Module config: embedding_dim=32, num_values=8, dropout=0.1 (identity here)
    B, F, D = 2, 8, 32

    key = jax.random.PRNGKey(0)
    kx, kw, kb = jax.random.split(key, 3)
    x = jax.random.normal(kx, (B, F), dtype=jnp.float32)
    weights = jax.random.normal(kw, (F, D), dtype=jnp.float32)   # nn.Parameter(randn)
    biases = jax.random.normal(kb, (F, D), dtype=jnp.float32)    # nn.Parameter(randn)

    y = jax.block_until_ready(numerical_embedding(x, weights, biases))
    y_ref = x[:, :, None] * weights[None, :, :] + biases[None, :, :]
    assert y.shape == (B, F, D)
    assert jnp.allclose(y, y_ref, atol=1e-5, rtol=1e-4)

    # Non-divisible batch with an explicit tile: exercises the multi-step
    # pipelined grid and the masked partial last block (no pad / no slice copy).
    B2 = 1000
    x2 = jax.random.normal(jax.random.PRNGKey(1), (B2, F), dtype=jnp.float32)
    y2 = jax.block_until_ready(
        numerical_embedding(x2, weights, biases, block_b=128))
    y2_ref = x2[:, :, None] * weights[None, :, :] + biases[None, :, :]
    assert y2.shape == (B2, F, D)
    assert jnp.allclose(y2, y2_ref, atol=1e-5, rtol=1e-4)

    # Default tiling path on a larger batch (block_b=512, 8 grid steps).
    B3 = 4096
    x3 = jax.random.normal(jax.random.PRNGKey(2), (B3, F), dtype=jnp.float32)
    y3 = jax.block_until_ready(numerical_embedding(x3, weights, biases))
    y3_ref = x3[:, :, None] * weights[None, :, :] + biases[None, :, :]
    assert y3.shape == (B3, F, D)
    assert jnp.allclose(y3, y3_ref, atol=1e-5, rtol=1e-4)

    print("KERNEL_OK")
</pallas_src>

<mosaic_0001>
module attributes {stable_mosaic.version = 11 : i64} {
  func.func @_num_embed_kernel(%arg0: i32, %arg1: memref<2x8xf32, #tpu.memory_space<vmem>>, %arg2: memref<8x256xf32, #tpu.memory_space<vmem>>, %arg3: memref<1x256xf32, #tpu.memory_space<vmem>>, %arg4: memref<2x256xf32, #tpu.memory_space<vmem>>) attributes {dimension_semantics = [#tpu.dimension_semantics<parallel>], iteration_bounds = array<i64: 1>, scalar_prefetch = 0 : i64, scratch_operands = 0 : i64, tpu.core_type = #tpu.core_type<tc>, window_params = [{transform_indices = @transform_0, window_bounds = array<i64: 2, 8>}, {pipeline_mode = #tpu.pipeline_mode<synchronous>, transform_indices = @transform_1, window_bounds = array<i64: 8, 256>}, {pipeline_mode = #tpu.pipeline_mode<synchronous>, transform_indices = @transform_2, window_bounds = array<i64: 1, 256>}, {transform_indices = @transform_3, window_bounds = array<i64: 2, 256>}]} {
    %c0 = arith.constant 0 : index
    %c0_0 = arith.constant 0 : index
    %0 = vector.load %arg1[%c0, %c0_0] : memref<2x8xf32, #tpu.memory_space<vmem>>, vector<2x8xf32>
    %c0_1 = arith.constant 0 : index
    %c0_2 = arith.constant 0 : index
    %1 = vector.load %arg2[%c0_1, %c0_2] : memref<8x256xf32, #tpu.memory_space<vmem>>, vector<8x256xf32>
    %cst = arith.constant dense<0.000000e+00> : vector<2x256xf32>
    %2 = tpu.matmul %0, %1, %cst {dimension_numbers = #tpu.dot_dimension_numbers<[1], [0], [0], [1], [0, 0, 1, 1], [], []>} : vector<2x8xf32>, vector<8x256xf32>, vector<2x256xf32> -> vector<2x256xf32>
    %c0_3 = arith.constant 0 : index
    %c0_4 = arith.constant 0 : index
    %3 = vector.load %arg3[%c0_3, %c0_4] : memref<1x256xf32, #tpu.memory_space<vmem>>, vector<1x256xf32>
    %4 = vector.broadcast %3 : vector<1x256xf32> to vector<2x256xf32>
    %5 = arith.addf %2, %4 : vector<2x256xf32>
    %c0_5 = arith.constant 0 : index
    %c0_6 = arith.constant 0 : index
    %6 = vector.load %arg4[%c0_5, %c0_6] : memref<2x256xf32, #tpu.memory_space<vmem>>, vector<2x256xf32>
    tpu.vector_store %arg4[%c0_5, %c0_6], %5 {strides = array<i32>} : memref<2x256xf32, #tpu.memory_space<vmem>>, vector<2x256xf32>,
    return
  }
  func.func @transform_0(%arg0: i32) -> (i32, i32) {
    %c0_i32 = arith.constant 0 : i32
    %c0_i32_0 = arith.constant 0 : i32
    return %arg0, %c0_i32 : i32, i32
  }
  func.func @transform_1(%arg0: i32) -> (i32, i32) {
    %c0_i32 = arith.constant 0 : i32
    %c0_i32_0 = arith.constant 0 : i32
    %c0_i32_1 = arith.constant 0 : i32
    return %c0_i32, %c0_i32_0 : i32, i32
  }
  func.func @transform_2(%arg0: i32) -> (i32, i32) {
    %c0_i32 = arith.constant 0 : i32
    %c0_i32_0 = arith.constant 0 : i32
    %c0_i32_1 = arith.constant 0 : i32
    return %c0_i32, %c0_i32_0 : i32, i32
  }
  func.func @transform_3(%arg0: i32) -> (i32, i32) {
    %c0_i32 = arith.constant 0 : i32
    %c0_i32_0 = arith.constant 0 : i32
    return %arg0, %c0_i32 : i32, i32
  }
}

</mosaic_0001>

<llo_original>
// kernel: tpu_custom_call.1
$region0: #{tpu_custom_call.1}
  #allocation0 [shape = 'u32[]', space=smem, size = 0x4, offset = 0x4, fixed_abs, tag = 'smem constant byte address 0x4 - core index']
  #allocation1 [shape = 'u32[72,128]{1,0:T(1,128)}', space=vmem, size = 0x9000, scoped, tag = 'internal scratch']
  %s0 = inlined_call_operand.hbm [shape: f32[2,8], index: 0, kind: input, shape index: {}]
  %s1 = inlined_call_operand.hbm [shape: f32[8,256], index: 1, kind: input, shape index: {}]
  %s2 = inlined_call_operand.hbm [shape: f32[1,256], index: 2, kind: input, shape index: {}]
  %s3 = inlined_call_operand.hbm [shape: f32[2,256], index: 3, kind: output, shape index: {}]
  %s4 = sld [smem:[#allocation0]]
  $region34: #{tpu_custom_call.1} parent=0
    _
  %s6 = ssub.s32 1, %s4
  %s7 = scalar_select 0, %s6, %s4
  $region1: #{tpu_custom_call.1} parent=0
    #allocation2 [shape = 'u8[1024]{0}', space=vmem, size = 0x400, scoped, tag = 'input window, operand 0, single buffered']
    #allocation3 [shape = 's32[1]{0}', space=sflag, size = 0x4, scoped, tag = 'scoped memory for tpu_custom_call.1']
    #allocation4 [shape = 's32[1]{0}', space=sflag, size = 0x4, scoped, tag = 'scoped memory for tpu_custom_call.1']
    #allocation5 [shape = 'u8[8192]{0}', space=vmem, size = 0x2000, scoped, tag = 'input window, operand 1, single buffered']
    #allocation6 [shape = 's32[1]{0}', space=sflag, size = 0x4, scoped, tag = 'scoped memory for tpu_custom_call.1']
    #allocation7 [shape = 'u8[1024]{0}', space=vmem, size = 0x400, scoped, tag = 'input window, operand 2, single buffered']
    #allocation8 [shape = 'u8[2048]{0}', space=vmem, size = 0x800, scoped, tag = 'output window, operand 0, single buffered']
    %8 = vsyncpa [#allocation3], 0
    %9 = vsyncpa [#allocation6], 0
    %10 = vsyncpa [#allocation4], 0
    // Predicated region
    $region2: #{tpu_custom_call.1} parent=1 // pred_check
      _
    $region3: #{tpu_custom_call.1} parent=1 // pred_check_branch
      %12 = sbr.rel (0) target = $region5
    $region4: #{tpu_custom_call.1} parent=1 // pred_region
      %14 = vsyncadd [#allocation3], 0
      %s16 = sshll.u32 %s0, 4
      %s17 = int_to_ptr.hbm [resolvable:$true] %s16
      %s18 = sshll.u32 [#allocation2], 4
      %s19 = int_to_ptr.vmem [resolvable:$true] %s18
      %21 = dma.hbm_to_vmem [thread:$0]  %s17, 32, %s19, [#allocation3]
    $region5: #{tpu_custom_call.1} parent=1 // pred_fallthru
      _
    // Predicated region
    $region6: #{tpu_custom_call.1} parent=1 // pred_check
      _
    $region7: #{tpu_custom_call.1} parent=1 // pred_check_branch
      %23 = sbr.rel (0) target = $region9
    $region8: #{tpu_custom_call.1} parent=1 // pred_region
      %25 = vsyncadd [#allocation6], 0
      %s27 = sshll.u32 %s1, 4
      %s28 = int_to_ptr.hbm [resolvable:$true] %s27
      %s29 = sshll.u32 [#allocation5], 4
      %s30 = int_to_ptr.vmem [resolvable:$true] %s29
      %32 = dma.hbm_to_vmem [thread:$0]  %s28, 256, %s30, [#allocation6]
    $region9: #{tpu_custom_call.1} parent=1 // pred_fallthru
      _
    // Predicated region
    $region10: #{tpu_custom_call.1} parent=1 // pred_check
      _
    $region11: #{tpu_custom_call.1} parent=1 // pred_check_branch
      %34 = sbr.rel (0) target = $region13
    $region12: #{tpu_custom_call.1} parent=1 // pred_region
      %36 = vsyncadd [#allocation6], 0
      %s38 = sshll.u32 %s2, 4
      %s39 = int_to_ptr.hbm [resolvable:$true] %s38
      %s40 = sshll.u32 [#allocation7], 4
      %s41 = int_to_ptr.vmem [resolvable:$true] %s40
      %43 = dma.hbm_to_vmem [thread:$0]  %s39, 32, %s41, [#allocation6]
    $region13: #{tpu_custom_call.1} parent=1 // pred_fallthru
      _
    // Predicated region
    $region14: #{tpu_custom_call.1} parent=1 // pred_check
      _
    $region15: #{tpu_custom_call.1} parent=1 // pred_check_branch
      %45 = sbr.rel (0) target = $region17
    $region16: #{tpu_custom_call.1} parent=1 // pred_region
      %47 = dma.done [#allocation3], 32
    $region17: #{tpu_custom_call.1} parent=1 // pred_fallthru
      _
    // Predicated region
    $region18: #{tpu_custom_call.1} parent=1 // pred_check
      _
    $region19: #{tpu_custom_call.1} parent=1 // pred_check_branch
      %49 = sbr.rel (0) target = $region21
    $region20: #{tpu_custom_call.1} parent=1 // pred_region
      %51 = dma.done [#allocation6], 256
    $region21: #{tpu_custom_call.1} parent=1 // pred_fallthru
      _
    // Predicated region
    $region22: #{tpu_custom_call.1} parent=1 // pred_check
      _
    $region23: #{tpu_custom_call.1} parent=1 // pred_check_branch
      %53 = sbr.rel (0) target = $region25
    $region24: #{tpu_custom_call.1} parent=1 // pred_region
      %55 = dma.done [#allocation6], 32
    $region25: #{tpu_custom_call.1} parent=1 // pred_fallthru
      _
    %v56 = vld [vmem:[#allocation2] sm:$0x3]
    %v57 = vld [vmem:[#allocation5] sm:$0xff]
    %v58 = vld [vmem:[#allocation5 + $0x8] sm:$0xff]
    %v59 = vld [vmem:[#allocation7] sm:$0x3]
    %v61 = vperm.slane %v59, 0
    %v62 = vperm.slane %v59, 1
    %vm65 = vcmask 64512
    %v67 = vsel %vm65, %v56, 0
    %69 = vmatpush.msra.mxu0 0.0
    %70 = vmatpush.msra.mxu0 0.0
    %71 = vmatpush.msra.mxu0 0.0
    %72 = vmatpush.msra.mxu0 0.0
    %73 = vmatpush.msra.mxu0 0.0
    %74 = vmatpush.msra.mxu0 0.0
    %75 = vmatpush.msra.mxu0 0.0
    %76 = vmatpush.msra.mxu0 0.0
    %77 = vmatpush.msra.mxu0 0.0
    %78 = vmatpush.msra.mxu0 0.0
    %79 = vmatpush.msra.mxu0 0.0
    %80 = vmatpush.msra.mxu0 0.0
    %81 = vmatpush.msra.mxu0 0.0
    %82 = vmatpush.msra.mxu0 0.0
    %83 = vmatpush.msra.mxu0 0.0
    %84 = vmatpush.msra.mxu0 %v57
    %85 = vmatmul.f32.gmra.mxu0 %v67
    %v86 = vpop.f32.mrf.mxu0
    %v87 = vadd.f32 %v61, %v86
    %88 = vdwg.mxu0
    %89 = vmatpush.msra.mxu0 0.0
    %90 = vmatpush.msra.mxu0 0.0
    %91 = vmatpush.msra.mxu0 0.0
    %92 = vmatpush.msra.mxu0 0.0
    %93 = vmatpush.msra.mxu0 0.0
    %94 = vmatpush.msra.mxu0 0.0
    %95 = vmatpush.msra.mxu0 0.0
    %96 = vmatpush.msra.mxu0 0.0
    %97 = vmatpush.msra.mxu0 0.0
    %98 = vmatpush.msra.mxu0 0.0
    %99 = vmatpush.msra.mxu0 0.0
    %100 = vmatpush.msra.mxu0 0.0
    %101 = vmatpush.msra.mxu0 0.0
    %102 = vmatpush.msra.mxu0 0.0
    %103 = vmatpush.msra.mxu0 0.0
    %104 = vmatpush.msra.mxu0 %v58
    %105 = vmatmul.f32.gmra.mxu0 %v67
    %v106 = vpop.f32.mrf.mxu0
    %v107 = vadd.f32 %v62, %v106
    %108 = vdwg.mxu0
    %v111 = vrot.slane %v107, 6
    %vm112 = vcmask 1041408
    %v113 = vsel %vm112, %v87, %v111
    %115 = vst [vmem:[#allocation8] sm:$0xf] %v113
    // Predicated region
    $region26: #{tpu_custom_call.1} parent=1 // pred_check
      _
    $region27: #{tpu_custom_call.1} parent=1 // pred_check_branch
      %117 = sbr.rel (0) target = $region29
    $region28: #{tpu_custom_call.1} parent=1 // pred_region
      %119 = vsyncadd [#allocation4], 0
      %s121 = sshll.u32 [#allocation8], 4
      %s122 = int_to_ptr.vmem [resolvable:$true] %s121
      %s123 = sshll.u32 %s3, 4
      %s124 = int_to_ptr.hbm [resolvable:$true] %s123
      %126 = dma.vmem_to_hbm [thread:$0]  %s122, 64, %s124, [#allocation4]
    $region29: #{tpu_custom_call.1} parent=1 // pred_fallthru
      _
    // Predicated region
    $region30: #{tpu_custom_call.1} parent=1 // pred_check
      _
    $region31: #{tpu_custom_call.1} parent=1 // pred_check_branch
      %128 = sbr.rel (0) target = $region33
    $region32: #{tpu_custom_call.1} parent=1 // pred_region
      %130 = dma.done [#allocation4], 64
    $region33: #{tpu_custom_call.1} parent=1 // pred_fallthru
      _
    %131 = vsyncpa [#allocation3], 1
    %132 = vsyncpa [#allocation6], 1
    %133 = vsyncpa [#allocation4], 1

</llo_original>
